<compile_context>
chip_gen: v6e
topology: v6e:2x2x1
jax: 0.10.0
libtpu: 0.0.40
codegen_flags: <defaults>
</compile_context>

<pallas_src>
import functools

import jax
import jax.numpy as jnp
from jax.experimental import pallas as pl
from jax.experimental.pallas import tpu as pltpu

HIDDEN = 64          # fixed by the module definition (nn.Linear(input_dim, 64))
SUBLANE = 8          # TPU sublane width (f32)
MAX_TM = 2048        # row-tile cap (review: 512 was step-overhead-bound)


def _round_up(x: int, m: int) -> int:
    return ((x + m - 1) // m) * m


@functools.lru_cache(maxsize=None)
def _tpu_hw():
    """(vmem_capacity_bytes, num_tensorcores) with conservative fallbacks."""
    vmem = 64 * 1024 * 1024   # assume the smallest (v7x per-TC) if query fails
    cores = 1
    try:
        info = pltpu.get_tpu_info()
        vmem = int(getattr(info, "vmem_capacity_bytes", vmem))
        for attr in ("num_tensorcores", "tensorcores_per_chip", "num_cores"):
            v = getattr(info, attr, None)
            if v:
                cores = int(v)
                break
    except Exception:
        pass
    return vmem, cores


def _mlp_kernel(x_ref, w1_ref, b1_ref, w2_ref, b2_ref, o_ref):
    """Fused Linear -> ReLU -> Linear on one row-tile of the batch (all f32)."""
    x = x_ref[...]                                                # (tm, input_dim)
    h = jnp.dot(x, w1_ref[...], preferred_element_type=jnp.float32)
    h = jnp.maximum(h + b1_ref[...], 0.0)                         # bias + ReLU in f32
    y = jnp.dot(h, w2_ref[...], preferred_element_type=jnp.float32)
    o_ref[...] = (y + b2_ref[...]).astype(o_ref.dtype)


def _choose_tm(batch: int, input_dim: int, output_dim: int,
               cores: int, tile_budget: int) -> int:
    """Row tile: as large as the VMEM budget allows (cap MAX_TM), generation-aware."""
    # Weights/biases are double-buffered by the BlockSpec pipeline (see TODO above).
    weight_bytes = 4 * 2 * (input_dim * HIDDEN + HIDDEN + HIDDEN * output_dim + output_dim)
    budget = max(tile_budget - weight_bytes, 1 << 20)
    # Per batch-row f32 bytes: x tile (x2 buffers) + out tile (x2) + hidden intermediate.
    per_row = 4 * (2 * input_dim + 2 * output_dim + HIDDEN)
    cap = (budget // per_row // SUBLANE) * SUBLANE
    cap = max(SUBLANE, min(MAX_TM, cap))

    if batch <= cap:
        if cores > 1 and batch >= 2 * SUBLANE:
            # Split into two sublane-aligned halves so both TensorCores get work (v7x).
            return _round_up(pl.cdiv(batch, 2), SUBLANE)
        # Single step, block equal to the full batch dim (always a legal block shape).
        return batch
    # Batch larger than one tile: tile at (roughly) the cap; on multi-core chips
    # prefer a step count that is a multiple of the core count for even work.
    steps = pl.cdiv(batch, cap)
    if cores > 1:
        steps = _round_up(steps, cores)
    return min(cap, _round_up(pl.cdiv(batch, steps), SUBLANE))


@jax.jit
def learned_graph_observation_model(x, w1, b1, w2, b2):
    """x: (B, input_dim) f32.  Weights stored as [in, out] (pre-transposed vs PyTorch),
    biases as (1, dim).  Returns (B, output_dim) f32."""
    B, input_dim = x.shape
    output_dim = w2.shape[1]

    vmem_bytes, cores = _tpu_hw()
    tile_budget = max(vmem_bytes // 3, 8 << 20)                 # ~42 MiB v5e/v6e, ~21 MiB v7x
    vmem_limit = max(min(vmem_bytes // 2, 100 << 20), 32 << 20)  # 64 MiB v5e/v6e, 32 MiB v7x

    tm = _choose_tm(B, input_dim, output_dim, cores, tile_budget)
    grid = (pl.cdiv(B, tm),)   # ragged final block is masked by Pallas

    return pl.pallas_call(
        _mlp_kernel,
        out_shape=jax.ShapeDtypeStruct((B, output_dim), jnp.float32),
        grid_spec=pltpu.PrefetchScalarGridSpec(
            num_scalar_prefetch=0,
            grid=grid,
            in_specs=[
                pl.BlockSpec((tm, input_dim), lambda i: (i, 0)),        # x row-tile (unpadded)
                pl.BlockSpec((input_dim, HIDDEN), lambda i: (0, 0)),    # W1 (resident)
                pl.BlockSpec((1, HIDDEN), lambda i: (0, 0)),            # b1
                pl.BlockSpec((HIDDEN, output_dim), lambda i: (0, 0)),   # W2 (resident)
                pl.BlockSpec((1, output_dim), lambda i: (0, 0)),        # b2
            ],
            out_specs=pl.BlockSpec((tm, output_dim), lambda i: (i, 0)),  # narrow masked store
        ),
        compiler_params=pltpu.CompilerParams(
            dimension_semantics=("parallel",),
            vmem_limit_bytes=vmem_limit,
        ),
    )(x, w1, b1, w2, b2)


def init_params(key, input_dim, output_dim):
    """Deterministic init mimicking nn.Linear default (uniform(-1/sqrt(fan_in), 1/sqrt(fan_in)))."""
    k1, k2, k3, k4 = jax.random.split(key, 4)
    bound1 = 1.0 / jnp.sqrt(input_dim)
    bound2 = 1.0 / jnp.sqrt(HIDDEN)
    # Stored as [in, out] (transposed relative to PyTorch's [out, in]); biases as (1, dim).
    w1 = jax.random.uniform(k1, (input_dim, HIDDEN), jnp.float32, -bound1, bound1)
    b1 = jax.random.uniform(k2, (1, HIDDEN), jnp.float32, -bound1, bound1)
    w2 = jax.random.uniform(k3, (HIDDEN, output_dim), jnp.float32, -bound2, bound2)
    b2 = jax.random.uniform(k4, (1, output_dim), jnp.float32, -bound2, bound2)
    return w1, b1, w2, b2


def reference(x, w1, b1, w2, b2):
    """Pure-JAX reference of the PyTorch forward."""
    h = jnp.maximum(x @ w1 + b1, 0.0)
    return h @ w2 + b2


if __name__ == "__main__":
    key = jax.random.PRNGKey(0)
    k_x, k_p, k_x2, k_x3 = jax.random.split(key, 4)

    # Small shapes consistent with the module.
    batch, input_dim, output_dim = 8, 32, 16
    x = jax.random.normal(k_x, (batch, input_dim), jnp.float32)
    w1, b1, w2, b2 = init_params(k_p, input_dim, output_dim)

    out = jax.block_until_ready(learned_graph_observation_model(x, w1, b1, w2, b2))
    ref = reference(x, w1, b1, w2, b2)
    assert out.shape == (batch, output_dim)
    assert out.dtype == jnp.float32
    assert jnp.allclose(out, ref, atol=1e-5, rtol=1e-5)

    # Batch that is not a multiple of the sublane width (full-dim single block).
    batch2 = 37
    x2 = jax.random.normal(k_x2, (batch2, input_dim), jnp.float32)
    out2 = jax.block_until_ready(learned_graph_observation_model(x2, w1, b1, w2, b2))
    assert out2.shape == (batch2, output_dim)
    assert jnp.allclose(out2, reference(x2, w1, b1, w2, b2), atol=1e-5, rtol=1e-5)

    # Larger ragged batch (exercises the multi-step / partial-last-block path on v7x).
    batch3 = 300
    x3 = jax.random.normal(k_x3, (batch3, input_dim), jnp.float32)
    out3 = jax.block_until_ready(learned_graph_observation_model(x3, w1, b1, w2, b2))
    assert out3.shape == (batch3, output_dim)
    assert jnp.allclose(out3, reference(x3, w1, b1, w2, b2), atol=1e-5, rtol=1e-5)

    print("KERNEL_OK")
</pallas_src>

<mosaic_0001>
module attributes {stable_mosaic.version = 11 : i64} {
  func.func @_mlp_kernel(%arg0: i32, %arg1: memref<8x32xf32, #tpu.memory_space<vmem>>, %arg2: memref<32x64xf32, #tpu.memory_space<vmem>>, %arg3: memref<1x64xf32, #tpu.memory_space<vmem>>, %arg4: memref<64x16xf32, #tpu.memory_space<vmem>>, %arg5: memref<1x16xf32, #tpu.memory_space<vmem>>, %arg6: memref<8x16xf32, #tpu.memory_space<vmem>>) attributes {dimension_semantics = [#tpu.dimension_semantics<parallel>], iteration_bounds = array<i64: 1>, scalar_prefetch = 0 : i64, scratch_operands = 0 : i64, tpu.core_type = #tpu.core_type<tc>, window_params = [{transform_indices = @transform_0, window_bounds = array<i64: 8, 32>}, {pipeline_mode = #tpu.pipeline_mode<synchronous>, transform_indices = @transform_1, window_bounds = array<i64: 32, 64>}, {pipeline_mode = #tpu.pipeline_mode<synchronous>, transform_indices = @transform_2, window_bounds = array<i64: 1, 64>}, {pipeline_mode = #tpu.pipeline_mode<synchronous>, transform_indices = @transform_3, window_bounds = array<i64: 64, 16>}, {pipeline_mode = #tpu.pipeline_mode<synchronous>, transform_indices = @transform_4, window_bounds = array<i64: 1, 16>}, {transform_indices = @transform_5, window_bounds = array<i64: 8, 16>}]} {
    %c0 = arith.constant 0 : index
    %c0_0 = arith.constant 0 : index
    %0 = vector.load %arg1[%c0, %c0_0] : memref<8x32xf32, #tpu.memory_space<vmem>>, vector<8x32xf32>
    %c0_1 = arith.constant 0 : index
    %c0_2 = arith.constant 0 : index
    %1 = vector.load %arg2[%c0_1, %c0_2] : memref<32x64xf32, #tpu.memory_space<vmem>>, vector<32x64xf32>
    %cst = arith.constant dense<0.000000e+00> : vector<8x64xf32>
    %2 = tpu.matmul %0, %1, %cst {dimension_numbers = #tpu.dot_dimension_numbers<[1], [0], [0], [1], [0, 0, 1, 1], [], []>} : vector<8x32xf32>, vector<32x64xf32>, vector<8x64xf32> -> vector<8x64xf32>
    %c0_3 = arith.constant 0 : index
    %c0_4 = arith.constant 0 : index
    %3 = vector.load %arg3[%c0_3, %c0_4] : memref<1x64xf32, #tpu.memory_space<vmem>>, vector<1x64xf32>
    %4 = vector.broadcast %3 : vector<1x64xf32> to vector<8x64xf32>
    %5 = arith.addf %2, %4 : vector<8x64xf32>
    %cst_5 = arith.constant 0.000000e+00 : f32
    %6 = vector.broadcast %cst_5 : f32 to vector<8x64xf32>
    %7 = arith.maximumf %5, %6 : vector<8x64xf32>
    %c0_6 = arith.constant 0 : index
    %c0_7 = arith.constant 0 : index
    %8 = vector.load %arg4[%c0_6, %c0_7] : memref<64x16xf32, #tpu.memory_space<vmem>>, vector<64x16xf32>
    %cst_8 = arith.constant dense<0.000000e+00> : vector<8x16xf32>
    %9 = tpu.matmul %7, %8, %cst_8 {dimension_numbers = #tpu.dot_dimension_numbers<[1], [0], [0], [1], [0, 0, 1, 1], [], []>} : vector<8x64xf32>, vector<64x16xf32>, vector<8x16xf32> -> vector<8x16xf32>
    %c0_9 = arith.constant 0 : index
    %c0_10 = arith.constant 0 : index
    %10 = vector.load %arg5[%c0_9, %c0_10] : memref<1x16xf32, #tpu.memory_space<vmem>>, vector<1x16xf32>
    %11 = vector.broadcast %10 : vector<1x16xf32> to vector<8x16xf32>
    %12 = arith.addf %9, %11 : vector<8x16xf32>
    %c0_11 = arith.constant 0 : index
    %c0_12 = arith.constant 0 : index
    %13 = vector.load %arg6[%c0_11, %c0_12] : memref<8x16xf32, #tpu.memory_space<vmem>>, vector<8x16xf32>
    tpu.vector_store %arg6[%c0_11, %c0_12], %12 {strides = array<i32>} : memref<8x16xf32, #tpu.memory_space<vmem>>, vector<8x16xf32>,
    return
  }
  func.func @transform_0(%arg0: i32) -> (i32, i32) {
    %c0_i32 = arith.constant 0 : i32
    %c0_i32_0 = arith.constant 0 : i32
    return %arg0, %c0_i32 : i32, i32
  }
  func.func @transform_1(%arg0: i32) -> (i32, i32) {
    %c0_i32 = arith.constant 0 : i32
    %c0_i32_0 = arith.constant 0 : i32
    %c0_i32_1 = arith.constant 0 : i32
    return %c0_i32, %c0_i32_0 : i32, i32
  }
  func.func @transform_2(%arg0: i32) -> (i32, i32) {
    %c0_i32 = arith.constant 0 : i32
    %c0_i32_0 = arith.constant 0 : i32
    %c0_i32_1 = arith.constant 0 : i32
    return %c0_i32, %c0_i32_0 : i32, i32
  }
  func.func @transform_3(%arg0: i32) -> (i32, i32) {
    %c0_i32 = arith.constant 0 : i32
    %c0_i32_0 = arith.constant 0 : i32
    %c0_i32_1 = arith.constant 0 : i32
    return %c0_i32, %c0_i32_0 : i32, i32
  }
  func.func @transform_4(%arg0: i32) -> (i32, i32) {
    %c0_i32 = arith.constant 0 : i32
    %c0_i32_0 = arith.constant 0 : i32
    %c0_i32_1 = arith.constant 0 : i32
    return %c0_i32, %c0_i32_0 : i32, i32
  }
  func.func @transform_5(%arg0: i32) -> (i32, i32) {
    %c0_i32 = arith.constant 0 : i32
    %c0_i32_0 = arith.constant 0 : i32
    return %arg0, %c0_i32 : i32, i32
  }
}

</mosaic_0001>

<llo_original>
// kernel: learned_graph_observation_model.1
$region0: #{learned_graph_observation_model.1}
  #allocation0 [shape = 'u32[]', space=smem, size = 0x4, offset = 0x4, fixed_abs, tag = 'smem constant byte address 0x4 - core index']
  #allocation1 [shape = 'u32[144,128]{1,0:T(1,128)}', space=vmem, size = 0x12000, scoped, tag = 'internal scratch']
  %s0 = inlined_call_operand.vmem [shape: f32[8,32], index: 0, kind: input, shape index: {}]
  %s1 = inlined_call_operand.vmem [shape: f32[32,64], index: 1, kind: input, shape index: {}]
  %s2 = inlined_call_operand.vmem [shape: f32[1,64], index: 2, kind: input, shape index: {}]
  %s3 = inlined_call_operand.vmem [shape: f32[64,16], index: 3, kind: input, shape index: {}]
  %s4 = inlined_call_operand.vmem [shape: f32[1,16], index: 4, kind: input, shape index: {}]
  %s5 = inlined_call_operand.hbm [shape: f32[8,16], index: 5, kind: output, shape index: {}]
  %s6 = sld [smem:[#allocation0]]
  $region30: #{learned_graph_observation_model.1} parent=0
    _
  %s8 = ssub.s32 1, %s6
  %s9 = scalar_select 0, %s8, %s6
  $region1: #{learned_graph_observation_model.1} parent=0
    #allocation2 [shape = 'u8[4096]{0}', space=vmem, size = 0x1000, scoped, tag = 'output window, operand 0, single buffered']
    #allocation3 [shape = 's32[1]{0}', space=sflag, size = 0x4, scoped, tag = 'scoped memory for learned_graph_observation_model.1']
    %10 = vsyncpa [#allocation3], 0
    // Predicated region
    $region2: #{learned_graph_observation_model.1} parent=1 // pred_check
      _
    $region3: #{learned_graph_observation_model.1} parent=1 // pred_check_branch
      %12 = sbr.rel (0) target = $region5
    $region4: #{learned_graph_observation_model.1} parent=1 // pred_region
      _
    $region5: #{learned_graph_observation_model.1} parent=1 // pred_fallthru
      _
    // Predicated region
    $region6: #{learned_graph_observation_model.1} parent=1 // pred_check
      _
    $region7: #{learned_graph_observation_model.1} parent=1 // pred_check_branch
      %14 = sbr.rel (0) target = $region9
    $region8: #{learned_graph_observation_model.1} parent=1 // pred_region
      _
    $region9: #{learned_graph_observation_model.1} parent=1 // pred_fallthru
      _
    // Predicated region
    $region10: #{learned_graph_observation_model.1} parent=1 // pred_check
      _
    $region11: #{learned_graph_observation_model.1} parent=1 // pred_check_branch
      %16 = sbr.rel (0) target = $region13
    $region12: #{learned_graph_observation_model.1} parent=1 // pred_region
      _
    $region13: #{learned_graph_observation_model.1} parent=1 // pred_fallthru
      _
    // Predicated region
    $region14: #{learned_graph_observation_model.1} parent=1 // pred_check
      _
    $region15: #{learned_graph_observation_model.1} parent=1 // pred_check_branch
      %18 = sbr.rel (0) target = $region17
    $region16: #{learned_graph_observation_model.1} parent=1 // pred_region
      _
    $region17: #{learned_graph_observation_model.1} parent=1 // pred_fallthru
      _
    // Predicated region
    $region18: #{learned_graph_observation_model.1} parent=1 // pred_check
      _
    $region19: #{learned_graph_observation_model.1} parent=1 // pred_check_branch
      %20 = sbr.rel (0) target = $region21
    $region20: #{learned_graph_observation_model.1} parent=1 // pred_region
      _
    $region21: #{learned_graph_observation_model.1} parent=1 // pred_fallthru
      _
    %v21 = vld [vmem:[%s0] sm:$0xff]
    %v22 = vld [vmem:[%s1] sm:$0xff]
    %v23 = vld [vmem:[%s1 + $0x8] sm:$0xff]
    %v24 = vld [vmem:[%s1 + $0x10] sm:$0xff]
    %v25 = vld [vmem:[%s1 + $0x18] sm:$0xff]
    %v26 = vld [vmem:[%s2] sm:$0x1]
    %v28 = vlaneseq
    %v29 = vshrl.u32 %v28, 7
    %v30 = vsub.s32 0, %v29
    %v31 = vrot.slane %v26, %v30
    %vm33 = vcmask 261120
    %v35 = vsel %vm33, %v21, 0
    %37 = vmatprep.subr.mxu0 0.0
    %38 = vmatpush1.msra.mxu0 0.0
    %39 = vmatprep.subr.mxu0 0.0
    %40 = vmatpush1.msra.mxu0 0.0
    %41 = vmatprep.subr.mxu0 0.0
    %42 = vmatpush1.msra.mxu0 0.0
    %43 = vmatprep.subr.mxu0 0.0
    %44 = vmatpush1.msra.mxu0 0.0
    %45 = vmatprep.subr.mxu0 0.0
    %46 = vmatpush1.msra.mxu0 0.0
    %47 = vmatprep.subr.mxu0 0.0
    %48 = vmatpush1.msra.mxu0 0.0
    %49 = vmatprep.subr.mxu0 0.0
    %50 = vmatpush1.msra.mxu0 0.0
    %51 = vmatprep.subr.mxu0 0.0
    %52 = vmatpush1.msra.mxu0 0.0
    %53 = vmatprep.subr.mxu0 0.0
    %54 = vmatpush1.msra.mxu0 0.0
    %55 = vmatprep.subr.mxu0 0.0
    %56 = vmatpush1.msra.mxu0 0.0
    %57 = vmatprep.subr.mxu0 0.0
    %58 = vmatpush1.msra.mxu0 0.0
    %59 = vmatprep.subr.mxu0 0.0
    %60 = vmatpush1.msra.mxu0 0.0
    %61 = vmatprep.subr.mxu0 0.0
    %62 = vmatpush1.msra.mxu0 %v25
    %63 = vmatprep.subr.mxu0 0.0
    %64 = vmatpush1.msra.mxu0 %v24
    %65 = vmatprep.subr.mxu0 0.0
    %66 = vmatpush1.msra.mxu0 %v23
    %67 = vmatprep.subr.mxu0 0.0
    %68 = vmatpush1.msra.mxu0 %v22
    %69 = vmatprep.subr.mxu0 0.0
    %70 = vmatpush2.msra.mxu0 0.0
    %71 = vmatprep.subr.mxu0 0.0
    %72 = vmatpush2.msra.mxu0 0.0
    %73 = vmatprep.subr.mxu0 0.0
    %74 = vmatpush2.msra.mxu0 0.0
    %75 = vmatprep.subr.mxu0 0.0
    %76 = vmatpush2.msra.mxu0 0.0
    %77 = vmatprep.subr.mxu0 0.0
    %78 = vmatpush2.msra.mxu0 0.0
    %79 = vmatprep.subr.mxu0 0.0
    %80 = vmatpush2.msra.mxu0 0.0
    %81 = vmatprep.subr.mxu0 0.0
    %82 = vmatpush2.msra.mxu0 0.0
    %83 = vmatprep.subr.mxu0 0.0
    %84 = vmatpush2.msra.mxu0 0.0
    %85 = vmatprep.subr.mxu0 0.0
    %86 = vmatpush2.msra.mxu0 0.0
    %87 = vmatprep.subr.mxu0 0.0
    %88 = vmatpush2.msra.mxu0 0.0
    %89 = vmatprep.subr.mxu0 0.0
    %90 = vmatpush2.msra.mxu0 0.0
    %91 = vmatprep.subr.mxu0 0.0
    %92 = vmatpush2.msra.mxu0 0.0
    %93 = vmatprep.subr.mxu0 0.0
    %94 = vmatpush2.msra.mxu0 0.0
    %95 = vmatprep.subr.mxu0 0.0
    %96 = vmatpush2.msra.mxu0 0.0
    %97 = vmatprep.subr.mxu0 0.0
    %98 = vmatpush2.msra.mxu0 0.0
    %99 = vmatprep.subr.mxu0 0.0
    %100 = vmatpush2.msra.mxu0 0.0
    %101 = vmatprep.mubr.f32.mxu0 0.0
    %102 = vmatmul.mubr.f32.gmra.mxu0 %v35
    %v103 = vpop.f32.mrf.mxu0
    %v104 = vadd.f32 %v31, %v103
    %v105 = vpop.f32.mrf.mxu0
    %106 = vdwg.mxu0
    %v107 = vmax.f32 %v104, 0.0
    %v108 = vld [vmem:[%s3] sm:$0xff]
    %v109 = vld [vmem:[%s3 + $0x8] sm:$0xff]
    %v110 = vld [vmem:[%s3 + $0x10] sm:$0xff]
    %v111 = vld [vmem:[%s3 + $0x18] sm:$0xff]
    %v112 = vld [vmem:[%s3 + $0x20] sm:$0xff]
    %v113 = vld [vmem:[%s3 + $0x28] sm:$0xff]
    %v114 = vld [vmem:[%s3 + $0x30] sm:$0xff]
    %v115 = vld [vmem:[%s3 + $0x38] sm:$0xff]
    %v116 = vld [vmem:[%s4] sm:$0x1]
    %v118 = vlaneseq
    %v119 = vshrl.u32 %v118, 7
    %v120 = vsub.s32 0, %v119
    %v121 = vrot.slane %v116, %v120
    %vm123 = vcmask 523264
    %v125 = vsel %vm123, %v107, 0
    %127 = vmatprep.subr.mxu0 0.0
    %128 = vmatpush1.msra.mxu0 0.0
    %129 = vmatprep.subr.mxu0 0.0
    %130 = vmatpush1.msra.mxu0 0.0
    %131 = vmatprep.subr.mxu0 0.0
    %132 = vmatpush1.msra.mxu0 0.0
    %133 = vmatprep.subr.mxu0 0.0
    %134 = vmatpush1.msra.mxu0 0.0
    %135 = vmatprep.subr.mxu0 0.0
    %136 = vmatpush1.msra.mxu0 0.0
    %137 = vmatprep.subr.mxu0 0.0
    %138 = vmatpush1.msra.mxu0 0.0
    %139 = vmatprep.subr.mxu0 0.0
    %140 = vmatpush1.msra.mxu0 0.0
    %141 = vmatprep.subr.mxu0 0.0
    %142 = vmatpush1.msra.mxu0 0.0
    %143 = vmatprep.subr.mxu0 0.0
    %144 = vmatpush1.msra.mxu0 %v115
    %145 = vmatprep.subr.mxu0 0.0
    %146 = vmatpush1.msra.mxu0 %v114
    %147 = vmatprep.subr.mxu0 0.0
    %148 = vmatpush1.msra.mxu0 %v113
    %149 = vmatprep.subr.mxu0 0.0
    %150 = vmatpush1.msra.mxu0 %v112
    %151 = vmatprep.subr.mxu0 0.0
    %152 = vmatpush1.msra.mxu0 %v111
    %153 = vmatprep.subr.mxu0 0.0
    %154 = vmatpush1.msra.mxu0 %v110
    %155 = vmatprep.subr.mxu0 0.0
    %156 = vmatpush1.msra.mxu0 %v109
    %157 = vmatprep.subr.mxu0 0.0
    %158 = vmatpush1.msra.mxu0 %v108
    %159 = vmatprep.subr.mxu0 0.0
    %160 = vmatpush2.msra.mxu0 0.0
    %161 = vmatprep.subr.mxu0 0.0
    %162 = vmatpush2.msra.mxu0 0.0
    %163 = vmatprep.subr.mxu0 0.0
    %164 = vmatpush2.msra.mxu0 0.0
    %165 = vmatprep.subr.mxu0 0.0
    %166 = vmatpush2.msra.mxu0 0.0
    %167 = vmatprep.subr.mxu0 0.0
    %168 = vmatpush2.msra.mxu0 0.0
    %169 = vmatprep.subr.mxu0 0.0
    %170 = vmatpush2.msra.mxu0 0.0
    %171 = vmatprep.subr.mxu0 0.0
    %172 = vmatpush2.msra.mxu0 0.0
    %173 = vmatprep.subr.mxu0 0.0
    %174 = vmatpush2.msra.mxu0 0.0
    %175 = vmatprep.subr.mxu0 0.0
    %176 = vmatpush2.msra.mxu0 0.0
    %177 = vmatprep.subr.mxu0 0.0
    %178 = vmatpush2.msra.mxu0 0.0
    %179 = vmatprep.subr.mxu0 0.0
    %180 = vmatpush2.msra.mxu0 0.0
    %181 = vmatprep.subr.mxu0 0.0
    %182 = vmatpush2.msra.mxu0 0.0
    %183 = vmatprep.subr.mxu0 0.0
    %184 = vmatpush2.msra.mxu0 0.0
    %185 = vmatprep.subr.mxu0 0.0
    %186 = vmatpush2.msra.mxu0 0.0
    %187 = vmatprep.subr.mxu0 0.0
    %188 = vmatpush2.msra.mxu0 0.0
    %189 = vmatprep.subr.mxu0 0.0
    %190 = vmatpush2.msra.mxu0 0.0
    %191 = vmatprep.mubr.f32.mxu0 0.0
    %192 = vmatmul.mubr.f32.gmra.mxu0 %v125
    %v193 = vpop.f32.mrf.mxu0
    %v194 = vadd.f32 %v121, %v193
    %v195 = vpop.f32.mrf.mxu0
    %196 = vdwg.mxu0
    %vm197 = vcmask 130048
    %198 = vst.msk [vmem:[#allocation2] sm:$0xff] %vm197, %v194
    // Predicated region
    $region22: #{learned_graph_observation_model.1} parent=1 // pred_check
      _
    $region23: #{learned_graph_observation_model.1} parent=1 // pred_check_branch
      %200 = sbr.rel (0) target = $region25
    $region24: #{learned_graph_observation_model.1} parent=1 // pred_region
      %s202 = ssub.s32 128, 128
      %203 = vsyncadd [#allocation3], %s202
      %s205 = sshll.u32 [#allocation2], 4
      %s206 = int_to_ptr.vmem [resolvable:$true] %s205
      %208 = dma.vmem_to_hbm [thread:$0]  %s206, 128, %s5, [#allocation3]
    $region25: #{learned_graph_observation_model.1} parent=1 // pred_fallthru
      _
    // Predicated region
    $region26: #{learned_graph_observation_model.1} parent=1 // pred_check
      _
    $region27: #{learned_graph_observation_model.1} parent=1 // pred_check_branch
      %210 = sbr.rel (0) target = $region29
    $region28: #{learned_graph_observation_model.1} parent=1 // pred_region
      %211 = dma.done [#allocation3], 128
    $region29: #{learned_graph_observation_model.1} parent=1 // pred_fallthru
      _
    %212 = vsyncpa [#allocation3], 1

</llo_original>
